<compile_context>
chip_gen: v7x
topology: tpu7x:2x2x1
jax: 0.10.0
libtpu: 0.0.40
codegen_flags: <defaults>
</compile_context>

<pallas_src>
import functools

import jax
import jax.numpy as jnp
from jax.experimental import pallas as pl
from jax.experimental.pallas import tpu as pltpu


def _opt_net_kernel(x_ref, wih_ref, bias_ref, whh_ref, h0_ref, c0_ref,
                    out_ref, h_out_ref, c_out_ref, *, T, B, H):
    """Fused input projection + LSTM recurrence + deferred output sigmoid.

    x_ref    : (T*B, N)  time-major flattened inputs
    wih_ref  : (N, 4H)   W_ih^T with the g-gate columns pre-scaled by 2
    bias_ref : (1, 4H)   (b_ih + b_hh) with the g slice pre-scaled by 2
    whh_ref  : (H, 4H)   W_hh^T with the g-gate columns pre-scaled by 2
    h0/c0    : (B, H)    initial hidden / cell state
    out_ref  : (B, T*H)  sigmoid(h_t), lane-dense layout
    h_out/c_out_ref : (B, H) final hidden / cell state
    """
    # Fused input projection: a single (T*B, N) @ (N, 4H) MXU matmul plus a
    # broadcast bias add.  Off the serial h/c chain entirely.
    xproj = jnp.dot(x_ref[...], wih_ref[...],
                    preferred_element_type=jnp.float32) + bias_ref[...]

    h = h0_ref[...]
    c = c0_ref[...]
    whh = whh_ref[...]

    # T is a small static trip count -> fully unrolled, all indices static.
    for t in range(T):
        # Exactly one MXU push per step on the serial chain.
        gates = xproj[t * B:(t + 1) * B, :] + jnp.dot(
            h, whh, preferred_element_type=jnp.float32)

        # Single EUP pass over the whole (B, 4H) gate tile.
        sig = jax.nn.sigmoid(gates)
        i_g = sig[:, 0 * H:1 * H]
        f_g = sig[:, 1 * H:2 * H]
        # g pre-activation was scaled by 2 in the weights/bias, so
        # tanh(x) = 2*sigmoid(2x) - 1 needs only VPU ops here.
        g_g = 2.0 * sig[:, 2 * H:3 * H] - 1.0
        o_g = sig[:, 3 * H:4 * H]

        c = f_g * c + i_g * g_g
        h = o_g * jnp.tanh(c)

        # Raw h_t into the lane-dense output slab; sigmoid deferred.
        out_ref[:, t * H:(t + 1) * H] = h

    # Deferred output nonlinearity: one lane-dense EUP pass over (B, T*H).
    out_ref[...] = jax.nn.sigmoid(out_ref[...])
    h_out_ref[...] = h
    c_out_ref[...] = c


def opt_net_forward(configuration, hidden_state, cell_state,
                    w_ih, w_hh, b_ih, b_hh):
    """
    configuration: (B, T, N) float32
    hidden_state : (1, B, H) float32
    cell_state   : (1, B, H) float32
    w_ih: (4H, N), w_hh: (4H, H), b_ih/b_hh: (4H,)   (PyTorch LSTM layout,
    gate order i, f, g, o)
    Returns (sigmoid(output_seq) (B, T, H), h (1, B, H), c (1, B, H)).
    """
    B, T, N = configuration.shape
    H = hidden_state.shape[-1]

    # Fold the 2x of tanh(x) = 2*sigmoid(2x) - 1 into the g-gate rows
    # (rows [2H:3H) of the PyTorch weight layout) and the fused bias.
    scale = jnp.concatenate([
        jnp.ones((2 * H,), jnp.float32),
        jnp.full((H,), 2.0, jnp.float32),
        jnp.ones((H,), jnp.float32),
    ])
    wih_t = (w_ih.astype(jnp.float32) * scale[:, None]).T            # (N, 4H)
    whh_t = (w_hh.astype(jnp.float32) * scale[:, None]).T            # (H, 4H)
    bias = ((b_ih + b_hh).astype(jnp.float32) * scale)[None, :]      # (1, 4H)

    # Time-major, row-flattened input (layout plumbing only; the projection
    # matmul itself happens inside the kernel).
    x_tb = jnp.transpose(configuration.astype(jnp.float32),
                         (1, 0, 2)).reshape(T * B, N)                # (T*B, N)

    h0 = hidden_state[0].astype(jnp.float32)                         # (B, H)
    c0 = cell_state[0].astype(jnp.float32)                           # (B, H)

    kernel = functools.partial(_opt_net_kernel, T=T, B=B, H=H)
    vmem = pl.BlockSpec(memory_space=pltpu.MemorySpace.VMEM)

    out_flat, h_n, c_n = pl.pallas_call(
        kernel,
        out_shape=(
            jax.ShapeDtypeStruct((B, T * H), jnp.float32),  # sigmoid(h_t)
            jax.ShapeDtypeStruct((B, H), jnp.float32),      # h_T
            jax.ShapeDtypeStruct((B, H), jnp.float32),      # c_T
        ),
        in_specs=[vmem, vmem, vmem, vmem, vmem, vmem],
        out_specs=(vmem, vmem, vmem),
    )(x_tb, wih_t, bias, whh_t, h0, c0)

    out = out_flat.reshape(B, T, H)
    return out, h_n[None, :, :], c_n[None, :, :]


def _reference_forward(configuration, hidden_state, cell_state,
                       w_ih, w_hh, b_ih, b_hh):
    """Pure-JAX reference of the PyTorch LSTM forward for verification."""
    B, T, N = configuration.shape
    H = hidden_state.shape[-1]
    h = hidden_state[0]
    c = cell_state[0]
    outs = []
    for t in range(T):
        x = configuration[:, t, :]
        gates = x @ w_ih.T + b_ih + h @ w_hh.T + b_hh
        i = jax.nn.sigmoid(gates[:, 0 * H:1 * H])
        f = jax.nn.sigmoid(gates[:, 1 * H:2 * H])
        g = jnp.tanh(gates[:, 2 * H:3 * H])
        o = jax.nn.sigmoid(gates[:, 3 * H:4 * H])
        c = f * c + i * g
        h = o * jnp.tanh(c)
        outs.append(h)
    out = jnp.stack(outs, axis=1)
    return jax.nn.sigmoid(out), h[None], c[None]


if __name__ == "__main__":
    # Module config (small, consistent with Opt_net(N, hidden_layers)).
    N = 16            # input size (graph size)
    H = 32            # hidden_layers
    B = 2             # batch
    T = 8             # sequence length

    key = jax.random.PRNGKey(0)
    k1, k2, k3, k4, k5, k6, k7 = jax.random.split(key, 7)

    # Deterministic PyTorch-style uniform(-1/sqrt(H), 1/sqrt(H)) init.
    bound = 1.0 / (H ** 0.5)
    w_ih = jax.random.uniform(k1, (4 * H, N), jnp.float32, -bound, bound)
    w_hh = jax.random.uniform(k2, (4 * H, H), jnp.float32, -bound, bound)
    b_ih = jax.random.uniform(k3, (4 * H,), jnp.float32, -bound, bound)
    b_hh = jax.random.uniform(k4, (4 * H,), jnp.float32, -bound, bound)

    configuration = jax.random.normal(k5, (B, T, N), jnp.float32)
    hidden_state = jax.random.normal(k6, (1, B, H), jnp.float32)
    cell_state = jax.random.normal(k7, (1, B, H), jnp.float32)

    fwd = jax.jit(opt_net_forward)
    out, h_n, c_n = fwd(configuration, hidden_state, cell_state,
                        w_ih, w_hh, b_ih, b_hh)
    jax.block_until_ready((out, h_n, c_n))

    # Sanity check against pure-JAX reference.  Tolerance is slightly looser
    # than 1e-5 because the kernel uses tanh(x) = 2*sigmoid(2x) - 1 for the
    # g gate (a few-ulp numerics change compounded over T=8 steps); real bugs
    # (gate order, bias, reshape) would show up as ~0.1-1.0 errors.
    out_r, h_r, c_r = _reference_forward(configuration, hidden_state, cell_state,
                                         w_ih, w_hh, b_ih, b_hh)
    assert out.shape == (B, T, H) and h_n.shape == (1, B, H) and c_n.shape == (1, B, H)
    assert jnp.allclose(out, out_r, atol=1e-4, rtol=1e-4)
    assert jnp.allclose(h_n, h_r, atol=1e-4, rtol=1e-4)
    assert jnp.allclose(c_n, c_r, atol=1e-4, rtol=1e-4)

    print("KERNEL_OK")
</pallas_src>

<mosaic_0001>
module attributes {stable_mosaic.version = 11 : i64} {
  func.func @_opt_net_kernel(%arg0: memref<16x16xf32, #tpu.memory_space<vmem>>, %arg1: memref<16x128xf32, #tpu.memory_space<vmem>>, %arg2: memref<1x128xf32, #tpu.memory_space<vmem>>, %arg3: memref<32x128xf32, #tpu.memory_space<vmem>>, %arg4: memref<2x32xf32, #tpu.memory_space<vmem>>, %arg5: memref<2x32xf32, #tpu.memory_space<vmem>>, %arg6: memref<2x256xf32, #tpu.memory_space<vmem>>, %arg7: memref<2x32xf32, #tpu.memory_space<vmem>>, %arg8: memref<2x32xf32, #tpu.memory_space<vmem>>) attributes {dimension_semantics = [], scalar_prefetch = 0 : i64, scratch_operands = 0 : i64, tpu.core_type = #tpu.core_type<tc>} {
    %c0 = arith.constant 0 : index
    %c0_0 = arith.constant 0 : index
    %0 = vector.load %arg0[%c0, %c0_0] : memref<16x16xf32, #tpu.memory_space<vmem>>, vector<16x16xf32>
    %c0_1 = arith.constant 0 : index
    %c0_2 = arith.constant 0 : index
    %1 = vector.load %arg1[%c0_1, %c0_2] : memref<16x128xf32, #tpu.memory_space<vmem>>, vector<16x128xf32>
    %cst = arith.constant dense<0.000000e+00> : vector<16x128xf32>
    %2 = tpu.matmul %0, %1, %cst {dimension_numbers = #tpu.dot_dimension_numbers<[1], [0], [0], [1], [0, 0, 1, 1], [], []>} : vector<16x16xf32>, vector<16x128xf32>, vector<16x128xf32> -> vector<16x128xf32>
    %c0_3 = arith.constant 0 : index
    %c0_4 = arith.constant 0 : index
    %3 = vector.load %arg2[%c0_3, %c0_4] : memref<1x128xf32, #tpu.memory_space<vmem>>, vector<1x128xf32>
    %4 = vector.broadcast %3 : vector<1x128xf32> to vector<16x128xf32>
    %5 = arith.addf %2, %4 : vector<16x128xf32>
    %c0_5 = arith.constant 0 : index
    %c0_6 = arith.constant 0 : index
    %6 = vector.load %arg4[%c0_5, %c0_6] : memref<2x32xf32, #tpu.memory_space<vmem>>, vector<2x32xf32>
    %c0_7 = arith.constant 0 : index
    %c0_8 = arith.constant 0 : index
    %7 = vector.load %arg5[%c0_7, %c0_8] : memref<2x32xf32, #tpu.memory_space<vmem>>, vector<2x32xf32>
    %c0_9 = arith.constant 0 : index
    %c0_10 = arith.constant 0 : index
    %8 = vector.load %arg3[%c0_9, %c0_10] : memref<32x128xf32, #tpu.memory_space<vmem>>, vector<32x128xf32>
    %9 = vector.extract_strided_slice %5 {offsets = [0, 0], sizes = [2, 128], strides = [1, 1]} : vector<16x128xf32> to vector<2x128xf32>
    %cst_11 = arith.constant dense<0.000000e+00> : vector<2x128xf32>
    %10 = tpu.matmul %6, %8, %cst_11 {dimension_numbers = #tpu.dot_dimension_numbers<[1], [0], [0], [1], [0, 0, 1, 1], [], []>} : vector<2x32xf32>, vector<32x128xf32>, vector<2x128xf32> -> vector<2x128xf32>
    %11 = arith.addf %9, %10 : vector<2x128xf32>
    %12 = arith.negf %11 : vector<2x128xf32>
    %13 = math.exp %12 : vector<2x128xf32>
    %cst_12 = arith.constant 1.000000e+00 : f32
    %14 = vector.broadcast %cst_12 : f32 to vector<2x128xf32>
    %15 = arith.addf %14, %13 : vector<2x128xf32>
    %16 = arith.divf %14, %15 : vector<2x128xf32>
    %17 = vector.extract_strided_slice %16 {offsets = [0, 0], sizes = [2, 32], strides = [1, 1]} : vector<2x128xf32> to vector<2x32xf32>
    %18 = vector.extract_strided_slice %16 {offsets = [0, 32], sizes = [2, 32], strides = [1, 1]} : vector<2x128xf32> to vector<2x32xf32>
    %19 = vector.extract_strided_slice %16 {offsets = [0, 64], sizes = [2, 32], strides = [1, 1]} : vector<2x128xf32> to vector<2x32xf32>
    %cst_13 = arith.constant 2.000000e+00 : f32
    %20 = vector.broadcast %cst_13 : f32 to vector<2x32xf32>
    %21 = arith.mulf %20, %19 : vector<2x32xf32>
    %cst_14 = arith.constant 1.000000e+00 : f32
    %22 = vector.broadcast %cst_14 : f32 to vector<2x32xf32>
    %23 = arith.subf %21, %22 : vector<2x32xf32>
    %24 = vector.extract_strided_slice %16 {offsets = [0, 96], sizes = [2, 32], strides = [1, 1]} : vector<2x128xf32> to vector<2x32xf32>
    %25 = arith.mulf %18, %7 : vector<2x32xf32>
    %26 = arith.mulf %17, %23 : vector<2x32xf32>
    %27 = arith.addf %25, %26 : vector<2x32xf32>
    %28 = math.tanh %27 : vector<2x32xf32>
    %29 = arith.mulf %24, %28 : vector<2x32xf32>
    %c0_15 = arith.constant 0 : index
    %c0_16 = arith.constant 0 : index
    %30 = vector.load %arg6[%c0_15, %c0_16] : memref<2x256xf32, #tpu.memory_space<vmem>>, vector<2x32xf32>
    tpu.vector_store %arg6[%c0_15, %c0_16], %29 {strides = array<i32>} : memref<2x256xf32, #tpu.memory_space<vmem>>, vector<2x32xf32>,
    %31 = vector.extract_strided_slice %5 {offsets = [2, 0], sizes = [2, 128], strides = [1, 1]} : vector<16x128xf32> to vector<2x128xf32>
    %cst_17 = arith.constant dense<0.000000e+00> : vector<2x128xf32>
    %32 = tpu.matmul %29, %8, %cst_17 {dimension_numbers = #tpu.dot_dimension_numbers<[1], [0], [0], [1], [0, 0, 1, 1], [], []>} : vector<2x32xf32>, vector<32x128xf32>, vector<2x128xf32> -> vector<2x128xf32>
    %33 = arith.addf %31, %32 : vector<2x128xf32>
    %34 = arith.negf %33 : vector<2x128xf32>
    %35 = math.exp %34 : vector<2x128xf32>
    %cst_18 = arith.constant 1.000000e+00 : f32
    %36 = vector.broadcast %cst_18 : f32 to vector<2x128xf32>
    %37 = arith.addf %36, %35 : vector<2x128xf32>
    %38 = arith.divf %36, %37 : vector<2x128xf32>
    %39 = vector.extract_strided_slice %38 {offsets = [0, 0], sizes = [2, 32], strides = [1, 1]} : vector<2x128xf32> to vector<2x32xf32>
    %40 = vector.extract_strided_slice %38 {offsets = [0, 32], sizes = [2, 32], strides = [1, 1]} : vector<2x128xf32> to vector<2x32xf32>
    %41 = vector.extract_strided_slice %38 {offsets = [0, 64], sizes = [2, 32], strides = [1, 1]} : vector<2x128xf32> to vector<2x32xf32>
    %cst_19 = arith.constant 2.000000e+00 : f32
    %42 = vector.broadcast %cst_19 : f32 to vector<2x32xf32>
    %43 = arith.mulf %42, %41 : vector<2x32xf32>
    %cst_20 = arith.constant 1.000000e+00 : f32
    %44 = vector.broadcast %cst_20 : f32 to vector<2x32xf32>
    %45 = arith.subf %43, %44 : vector<2x32xf32>
    %46 = vector.extract_strided_slice %38 {offsets = [0, 96], sizes = [2, 32], strides = [1, 1]} : vector<2x128xf32> to vector<2x32xf32>
    %47 = arith.mulf %40, %27 : vector<2x32xf32>
    %48 = arith.mulf %39, %45 : vector<2x32xf32>
    %49 = arith.addf %47, %48 : vector<2x32xf32>
    %50 = math.tanh %49 : vector<2x32xf32>
    %51 = arith.mulf %46, %50 : vector<2x32xf32>
    %c0_21 = arith.constant 0 : index
    %c32 = arith.constant 32 : index
    %52 = vector.load %arg6[%c0_21, %c32] : memref<2x256xf32, #tpu.memory_space<vmem>>, vector<2x32xf32>
    tpu.vector_store %arg6[%c0_21, %c32], %51 {strides = array<i32>} : memref<2x256xf32, #tpu.memory_space<vmem>>, vector<2x32xf32>,
    %53 = vector.extract_strided_slice %5 {offsets = [4, 0], sizes = [2, 128], strides = [1, 1]} : vector<16x128xf32> to vector<2x128xf32>
    %cst_22 = arith.constant dense<0.000000e+00> : vector<2x128xf32>
    %54 = tpu.matmul %51, %8, %cst_22 {dimension_numbers = #tpu.dot_dimension_numbers<[1], [0], [0], [1], [0, 0, 1, 1], [], []>} : vector<2x32xf32>, vector<32x128xf32>, vector<2x128xf32> -> vector<2x128xf32>
    %55 = arith.addf %53, %54 : vector<2x128xf32>
    %56 = arith.negf %55 : vector<2x128xf32>
    %57 = math.exp %56 : vector<2x128xf32>
    %cst_23 = arith.constant 1.000000e+00 : f32
    %58 = vector.broadcast %cst_23 : f32 to vector<2x128xf32>
    %59 = arith.addf %58, %57 : vector<2x128xf32>
    %60 = arith.divf %58, %59 : vector<2x128xf32>
    %61 = vector.extract_strided_slice %60 {offsets = [0, 0], sizes = [2, 32], strides = [1, 1]} : vector<2x128xf32> to vector<2x32xf32>
    %62 = vector.extract_strided_slice %60 {offsets = [0, 32], sizes = [2, 32], strides = [1, 1]} : vector<2x128xf32> to vector<2x32xf32>
    %63 = vector.extract_strided_slice %60 {offsets = [0, 64], sizes = [2, 32], strides = [1, 1]} : vector<2x128xf32> to vector<2x32xf32>
    %cst_24 = arith.constant 2.000000e+00 : f32
    %64 = vector.broadcast %cst_24 : f32 to vector<2x32xf32>
    %65 = arith.mulf %64, %63 : vector<2x32xf32>
    %cst_25 = arith.constant 1.000000e+00 : f32
    %66 = vector.broadcast %cst_25 : f32 to vector<2x32xf32>
    %67 = arith.subf %65, %66 : vector<2x32xf32>
    %68 = vector.extract_strided_slice %60 {offsets = [0, 96], sizes = [2, 32], strides = [1, 1]} : vector<2x128xf32> to vector<2x32xf32>
    %69 = arith.mulf %62, %49 : vector<2x32xf32>
    %70 = arith.mulf %61, %67 : vector<2x32xf32>
    %71 = arith.addf %69, %70 : vector<2x32xf32>
    %72 = math.tanh %71 : vector<2x32xf32>
    %73 = arith.mulf %68, %72 : vector<2x32xf32>
    %c0_26 = arith.constant 0 : index
    %c64 = arith.constant 64 : index
    %74 = vector.load %arg6[%c0_26, %c64] : memref<2x256xf32, #tpu.memory_space<vmem>>, vector<2x32xf32>
    tpu.vector_store %arg6[%c0_26, %c64], %73 {strides = array<i32>} : memref<2x256xf32, #tpu.memory_space<vmem>>, vector<2x32xf32>,
    %75 = vector.extract_strided_slice %5 {offsets = [6, 0], sizes = [2, 128], strides = [1, 1]} : vector<16x128xf32> to vector<2x128xf32>
    %cst_27 = arith.constant dense<0.000000e+00> : vector<2x128xf32>
    %76 = tpu.matmul %73, %8, %cst_27 {dimension_numbers = #tpu.dot_dimension_numbers<[1], [0], [0], [1], [0, 0, 1, 1], [], []>} : vector<2x32xf32>, vector<32x128xf32>, vector<2x128xf32> -> vector<2x128xf32>
    %77 = arith.addf %75, %76 : vector<2x128xf32>
    %78 = arith.negf %77 : vector<2x128xf32>
    %79 = math.exp %78 : vector<2x128xf32>
    %cst_28 = arith.constant 1.000000e+00 : f32
    %80 = vector.broadcast %cst_28 : f32 to vector<2x128xf32>
    %81 = arith.addf %80, %79 : vector<2x128xf32>
    %82 = arith.divf %80, %81 : vector<2x128xf32>
    %83 = vector.extract_strided_slice %82 {offsets = [0, 0], sizes = [2, 32], strides = [1, 1]} : vector<2x128xf32> to vector<2x32xf32>
    %84 = vector.extract_strided_slice %82 {offsets = [0, 32], sizes = [2, 32], strides = [1, 1]} : vector<2x128xf32> to vector<2x32xf32>
    %85 = vector.extract_strided_slice %82 {offsets = [0, 64], sizes = [2, 32], strides = [1, 1]} : vector<2x128xf32> to vector<2x32xf32>
    %cst_29 = arith.constant 2.000000e+00 : f32
    %86 = vector.broadcast %cst_29 : f32 to vector<2x32xf32>
    %87 = arith.mulf %86, %85 : vector<2x32xf32>
    %cst_30 = arith.constant 1.000000e+00 : f32
    %88 = vector.broadcast %cst_30 : f32 to vector<2x32xf32>
    %89 = arith.subf %87, %88 : vector<2x32xf32>
    %90 = vector.extract_strided_slice %82 {offsets = [0, 96], sizes = [2, 32], strides = [1, 1]} : vector<2x128xf32> to vector<2x32xf32>
    %91 = arith.mulf %84, %71 : vector<2x32xf32>
    %92 = arith.mulf %83, %89 : vector<2x32xf32>
    %93 = arith.addf %91, %92 : vector<2x32xf32>
    %94 = math.tanh %93 : vector<2x32xf32>
    %95 = arith.mulf %90, %94 : vector<2x32xf32>
    %c0_31 = arith.constant 0 : index
    %c96 = arith.constant 96 : index
    %96 = vector.load %arg6[%c0_31, %c96] : memref<2x256xf32, #tpu.memory_space<vmem>>, vector<2x32xf32>
    tpu.vector_store %arg6[%c0_31, %c96], %95 {strides = array<i32>} : memref<2x256xf32, #tpu.memory_space<vmem>>, vector<2x32xf32>,
    %97 = vector.extract_strided_slice %5 {offsets = [8, 0], sizes = [2, 128], strides = [1, 1]} : vector<16x128xf32> to vector<2x128xf32>
    %cst_32 = arith.constant dense<0.000000e+00> : vector<2x128xf32>
    %98 = tpu.matmul %95, %8, %cst_32 {dimension_numbers = #tpu.dot_dimension_numbers<[1], [0], [0], [1], [0, 0, 1, 1], [], []>} : vector<2x32xf32>, vector<32x128xf32>, vector<2x128xf32> -> vector<2x128xf32>
    %99 = arith.addf %97, %98 : vector<2x128xf32>
    %100 = arith.negf %99 : vector<2x128xf32>
    %101 = math.exp %100 : vector<2x128xf32>
    %cst_33 = arith.constant 1.000000e+00 : f32
    %102 = vector.broadcast %cst_33 : f32 to vector<2x128xf32>
    %103 = arith.addf %102, %101 : vector<2x128xf32>
    %104 = arith.divf %102, %103 : vector<2x128xf32>
    %105 = vector.extract_strided_slice %104 {offsets = [0, 0], sizes = [2, 32], strides = [1, 1]} : vector<2x128xf32> to vector<2x32xf32>
    %106 = vector.extract_strided_slice %104 {offsets = [0, 32], sizes = [2, 32], strides = [1, 1]} : vector<2x128xf32> to vector<2x32xf32>
    %107 = vector.extract_strided_slice %104 {offsets = [0, 64], sizes = [2, 32], strides = [1, 1]} : vector<2x128xf32> to vector<2x32xf32>
    %cst_34 = arith.constant 2.000000e+00 : f32
    %108 = vector.broadcast %cst_34 : f32 to vector<2x32xf32>
    %109 = arith.mulf %108, %107 : vector<2x32xf32>
    %cst_35 = arith.constant 1.000000e+00 : f32
    %110 = vector.broadcast %cst_35 : f32 to vector<2x32xf32>
    %111 = arith.subf %109, %110 : vector<2x32xf32>
    %112 = vector.extract_strided_slice %104 {offsets = [0, 96], sizes = [2, 32], strides = [1, 1]} : vector<2x128xf32> to vector<2x32xf32>
    %113 = arith.mulf %106, %93 : vector<2x32xf32>
    %114 = arith.mulf %105, %111 : vector<2x32xf32>
    %115 = arith.addf %113, %114 : vector<2x32xf32>
    %116 = math.tanh %115 : vector<2x32xf32>
    %117 = arith.mulf %112, %116 : vector<2x32xf32>
    %c0_36 = arith.constant 0 : index
    %c128 = arith.constant 128 : index
    %118 = vector.load %arg6[%c0_36, %c128] : memref<2x256xf32, #tpu.memory_space<vmem>>, vector<2x32xf32>
    tpu.vector_store %arg6[%c0_36, %c128], %117 {strides = array<i32>} : memref<2x256xf32, #tpu.memory_space<vmem>>, vector<2x32xf32>,
    %119 = vector.extract_strided_slice %5 {offsets = [10, 0], sizes = [2, 128], strides = [1, 1]} : vector<16x128xf32> to vector<2x128xf32>
    %cst_37 = arith.constant dense<0.000000e+00> : vector<2x128xf32>
    %120 = tpu.matmul %117, %8, %cst_37 {dimension_numbers = #tpu.dot_dimension_numbers<[1], [0], [0], [1], [0, 0, 1, 1], [], []>} : vector<2x32xf32>, vector<32x128xf32>, vector<2x128xf32> -> vector<2x128xf32>
    %121 = arith.addf %119, %120 : vector<2x128xf32>
    %122 = arith.negf %121 : vector<2x128xf32>
    %123 = math.exp %122 : vector<2x128xf32>
    %cst_38 = arith.constant 1.000000e+00 : f32
    %124 = vector.broadcast %cst_38 : f32 to vector<2x128xf32>
    %125 = arith.addf %124, %123 : vector<2x128xf32>
    %126 = arith.divf %124, %125 : vector<2x128xf32>
    %127 = vector.extract_strided_slice %126 {offsets = [0, 0], sizes = [2, 32], strides = [1, 1]} : vector<2x128xf32> to vector<2x32xf32>
    %128 = vector.extract_strided_slice %126 {offsets = [0, 32], sizes = [2, 32], strides = [1, 1]} : vector<2x128xf32> to vector<2x32xf32>
    %129 = vector.extract_strided_slice %126 {offsets = [0, 64], sizes = [2, 32], strides = [1, 1]} : vector<2x128xf32> to vector<2x32xf32>
    %cst_39 = arith.constant 2.000000e+00 : f32
    %130 = vector.broadcast %cst_39 : f32 to vector<2x32xf32>
    %131 = arith.mulf %130, %129 : vector<2x32xf32>
    %cst_40 = arith.constant 1.000000e+00 : f32
    %132 = vector.broadcast %cst_40 : f32 to vector<2x32xf32>
    %133 = arith.subf %131, %132 : vector<2x32xf32>
    %134 = vector.extract_strided_slice %126 {offsets = [0, 96], sizes = [2, 32], strides = [1, 1]} : vector<2x128xf32> to vector<2x32xf32>
    %135 = arith.mulf %128, %115 : vector<2x32xf32>
    %136 = arith.mulf %127, %133 : vector<2x32xf32>
    %137 = arith.addf %135, %136 : vector<2x32xf32>
    %138 = math.tanh %137 : vector<2x32xf32>
    %139 = arith.mulf %134, %138 : vector<2x32xf32>
    %c0_41 = arith.constant 0 : index
    %c160 = arith.constant 160 : index
    %140 = vector.load %arg6[%c0_41, %c160] : memref<2x256xf32, #tpu.memory_space<vmem>>, vector<2x32xf32>
    tpu.vector_store %arg6[%c0_41, %c160], %139 {strides = array<i32>} : memref<2x256xf32, #tpu.memory_space<vmem>>, vector<2x32xf32>,
    %141 = vector.extract_strided_slice %5 {offsets = [12, 0], sizes = [2, 128], strides = [1, 1]} : vector<16x128xf32> to vector<2x128xf32>
    %cst_42 = arith.constant dense<0.000000e+00> : vector<2x128xf32>
    %142 = tpu.matmul %139, %8, %cst_42 {dimension_numbers = #tpu.dot_dimension_numbers<[1], [0], [0], [1], [0, 0, 1, 1], [], []>} : vector<2x32xf32>, vector<32x128xf32>, vector<2x128xf32> -> vector<2x128xf32>
    %143 = arith.addf %141, %142 : vector<2x128xf32>
    %144 = arith.negf %143 : vector<2x128xf32>
    %145 = math.exp %144 : vector<2x128xf32>
    %cst_43 = arith.constant 1.000000e+00 : f32
    %146 = vector.broadcast %cst_43 : f32 to vector<2x128xf32>
    %147 = arith.addf %146, %145 : vector<2x128xf32>
    %148 = arith.divf %146, %147 : vector<2x128xf32>
    %149 = vector.extract_strided_slice %148 {offsets = [0, 0], sizes = [2, 32], strides = [1, 1]} : vector<2x128xf32> to vector<2x32xf32>
    %150 = vector.extract_strided_slice %148 {offsets = [0, 32], sizes = [2, 32], strides = [1, 1]} : vector<2x128xf32> to vector<2x32xf32>
    %151 = vector.extract_strided_slice %148 {offsets = [0, 64], sizes = [2, 32], strides = [1, 1]} : vector<2x128xf32> to vector<2x32xf32>
    %cst_44 = arith.constant 2.000000e+00 : f32
    %152 = vector.broadcast %cst_44 : f32 to vector<2x32xf32>
    %153 = arith.mulf %152, %151 : vector<2x32xf32>
    %cst_45 = arith.constant 1.000000e+00 : f32
    %154 = vector.broadcast %cst_45 : f32 to vector<2x32xf32>
    %155 = arith.subf %153, %154 : vector<2x32xf32>
    %156 = vector.extract_strided_slice %148 {offsets = [0, 96], sizes = [2, 32], strides = [1, 1]} : vector<2x128xf32> to vector<2x32xf32>
    %157 = arith.mulf %150, %137 : vector<2x32xf32>
    %158 = arith.mulf %149, %155 : vector<2x32xf32>
    %159 = arith.addf %157, %158 : vector<2x32xf32>
    %160 = math.tanh %159 : vector<2x32xf32>
    %161 = arith.mulf %156, %160 : vector<2x32xf32>
    %c0_46 = arith.constant 0 : index
    %c192 = arith.constant 192 : index
    %162 = vector.load %arg6[%c0_46, %c192] : memref<2x256xf32, #tpu.memory_space<vmem>>, vector<2x32xf32>
    tpu.vector_store %arg6[%c0_46, %c192], %161 {strides = array<i32>} : memref<2x256xf32, #tpu.memory_space<vmem>>, vector<2x32xf32>,
    %163 = vector.extract_strided_slice %5 {offsets = [14, 0], sizes = [2, 128], strides = [1, 1]} : vector<16x128xf32> to vector<2x128xf32>
    %cst_47 = arith.constant dense<0.000000e+00> : vector<2x128xf32>
    %164 = tpu.matmul %161, %8, %cst_47 {dimension_numbers = #tpu.dot_dimension_numbers<[1], [0], [0], [1], [0, 0, 1, 1], [], []>} : vector<2x32xf32>, vector<32x128xf32>, vector<2x128xf32> -> vector<2x128xf32>
    %165 = arith.addf %163, %164 : vector<2x128xf32>
    %166 = arith.negf %165 : vector<2x128xf32>
    %167 = math.exp %166 : vector<2x128xf32>
    %cst_48 = arith.constant 1.000000e+00 : f32
    %168 = vector.broadcast %cst_48 : f32 to vector<2x128xf32>
    %169 = arith.addf %168, %167 : vector<2x128xf32>
    %170 = arith.divf %168, %169 : vector<2x128xf32>
    %171 = vector.extract_strided_slice %170 {offsets = [0, 0], sizes = [2, 32], strides = [1, 1]} : vector<2x128xf32> to vector<2x32xf32>
    %172 = vector.extract_strided_slice %170 {offsets = [0, 32], sizes = [2, 32], strides = [1, 1]} : vector<2x128xf32> to vector<2x32xf32>
    %173 = vector.extract_strided_slice %170 {offsets = [0, 64], sizes = [2, 32], strides = [1, 1]} : vector<2x128xf32> to vector<2x32xf32>
    %cst_49 = arith.constant 2.000000e+00 : f32
    %174 = vector.broadcast %cst_49 : f32 to vector<2x32xf32>
    %175 = arith.mulf %174, %173 : vector<2x32xf32>
    %cst_50 = arith.constant 1.000000e+00 : f32
    %176 = vector.broadcast %cst_50 : f32 to vector<2x32xf32>
    %177 = arith.subf %175, %176 : vector<2x32xf32>
    %178 = vector.extract_strided_slice %170 {offsets = [0, 96], sizes = [2, 32], strides = [1, 1]} : vector<2x128xf32> to vector<2x32xf32>
    %179 = arith.mulf %172, %159 : vector<2x32xf32>
    %180 = arith.mulf %171, %177 : vector<2x32xf32>
    %181 = arith.addf %179, %180 : vector<2x32xf32>
    %182 = math.tanh %181 : vector<2x32xf32>
    %183 = arith.mulf %178, %182 : vector<2x32xf32>
    %c0_51 = arith.constant 0 : index
    %c224 = arith.constant 224 : index
    %184 = vector.load %arg6[%c0_51, %c224] : memref<2x256xf32, #tpu.memory_space<vmem>>, vector<2x32xf32>
    tpu.vector_store %arg6[%c0_51, %c224], %183 {strides = array<i32>} : memref<2x256xf32, #tpu.memory_space<vmem>>, vector<2x32xf32>,
    %c0_52 = arith.constant 0 : index
    %c0_53 = arith.constant 0 : index
    %185 = vector.load %arg6[%c0_52, %c0_53] : memref<2x256xf32, #tpu.memory_space<vmem>>, vector<2x256xf32>
    %186 = arith.negf %185 : vector<2x256xf32>
    %187 = math.exp %186 : vector<2x256xf32>
    %cst_54 = arith.constant 1.000000e+00 : f32
    %188 = vector.broadcast %cst_54 : f32 to vector<2x256xf32>
    %189 = arith.addf %188, %187 : vector<2x256xf32>
    %190 = arith.divf %188, %189 : vector<2x256xf32>
    %c0_55 = arith.constant 0 : index
    %c0_56 = arith.constant 0 : index
    %191 = vector.load %arg6[%c0_55, %c0_56] : memref<2x256xf32, #tpu.memory_space<vmem>>, vector<2x256xf32>
    tpu.vector_store %arg6[%c0_55, %c0_56], %190 {strides = array<i32>} : memref<2x256xf32, #tpu.memory_space<vmem>>, vector<2x256xf32>,
    %c0_57 = arith.constant 0 : index
    %c0_58 = arith.constant 0 : index
    %192 = vector.load %arg7[%c0_57, %c0_58] : memref<2x32xf32, #tpu.memory_space<vmem>>, vector<2x32xf32>
    tpu.vector_store %arg7[%c0_57, %c0_58], %183 {strides = array<i32>} : memref<2x32xf32, #tpu.memory_space<vmem>>, vector<2x32xf32>,
    %c0_59 = arith.constant 0 : index
    %c0_60 = arith.constant 0 : index
    %193 = vector.load %arg8[%c0_59, %c0_60] : memref<2x32xf32, #tpu.memory_space<vmem>>, vector<2x32xf32>
    tpu.vector_store %arg8[%c0_59, %c0_60], %181 {strides = array<i32>} : memref<2x32xf32, #tpu.memory_space<vmem>>, vector<2x32xf32>,
    return
  }
}

</mosaic_0001>

<llo_original>
// kernel: opt_net_forward.1
$region0: #{opt_net_forward.1}
  #allocation0 [shape = 'u32[]', space=smem, size = 0x4, offset = 0x4, fixed_abs, tag = 'smem constant byte address 0x4 - core index']
  #allocation1 [shape = 'u32[144,128]{1,0:T(1,128)}', space=vmem, size = 0x12000, scoped, tag = 'internal scratch']
  %s0 = inlined_call_operand.vmem [shape: f32[16,16], index: 0, kind: input, shape index: {}]
  %s1 = inlined_call_operand.vmem [shape: f32[16,128], index: 1, kind: input, shape index: {}]
  %s2 = inlined_call_operand.vmem [shape: f32[1,128], index: 2, kind: input, shape index: {}]
  %s3 = inlined_call_operand.vmem [shape: f32[32,128], index: 3, kind: input, shape index: {}]
  %s4 = inlined_call_operand.vmem [shape: f32[2,32], index: 4, kind: input, shape index: {}]
  %s5 = inlined_call_operand.vmem [shape: f32[2,32], index: 5, kind: input, shape index: {}]
  %s6 = inlined_call_operand.vmem [shape: f32[2,256], index: 6, kind: output, shape index: {0}]
  %s7 = inlined_call_operand.hbm [shape: f32[2,32], index: 7, kind: output, shape index: {1}]
  %s8 = inlined_call_operand.hbm [shape: f32[2,32], index: 8, kind: output, shape index: {2}]
  %9 = xla_tuple %s6, %s7, %s8
  %s10 = sld [smem:[#allocation0]]
  $region50: #{opt_net_forward.1} parent=0
    _
  %s12 = ssub.s32 1, %s10
  %s13 = scalar_select 0, %s12, %s10
  $region1: #{opt_net_forward.1} parent=0
    #allocation2 [shape = 'u8[1024]{0}', space=vmem, size = 0x400, scoped, tag = 'output window, operand 1, single buffered']
    #allocation3 [shape = 's32[1]{0}', space=sflag, size = 0x4, scoped, tag = 'scoped memory for opt_net_forward.1']
    #allocation4 [shape = 'u8[1024]{0}', space=vmem, size = 0x400, scoped, tag = 'output window, operand 2, single buffered']
    #allocation5 [shape = 's32[1]{0}', space=sflag, size = 0x4, scoped, tag = 'scoped memory for opt_net_forward.1']
    %14 = vsyncpa [#allocation3], 0
    %15 = vsyncpa [#allocation5], 0
    // Predicated region
    $region2: #{opt_net_forward.1} parent=1 // pred_check
      _
    $region3: #{opt_net_forward.1} parent=1 // pred_check_branch
      %17 = sbr.rel (0) target = $region5
    $region4: #{opt_net_forward.1} parent=1 // pred_region
      _
    $region5: #{opt_net_forward.1} parent=1 // pred_fallthru
      _
    // Predicated region
    $region6: #{opt_net_forward.1} parent=1 // pred_check
      _
    $region7: #{opt_net_forward.1} parent=1 // pred_check_branch
      %19 = sbr.rel (0) target = $region9
    $region8: #{opt_net_forward.1} parent=1 // pred_region
      _
    $region9: #{opt_net_forward.1} parent=1 // pred_fallthru
      _
    // Predicated region
    $region10: #{opt_net_forward.1} parent=1 // pred_check
      _
    $region11: #{opt_net_forward.1} parent=1 // pred_check_branch
      %21 = sbr.rel (0) target = $region13
    $region12: #{opt_net_forward.1} parent=1 // pred_region
      _
    $region13: #{opt_net_forward.1} parent=1 // pred_fallthru
      _
    // Predicated region
    $region14: #{opt_net_forward.1} parent=1 // pred_check
      _
    $region15: #{opt_net_forward.1} parent=1 // pred_check_branch
      %23 = sbr.rel (0) target = $region17
    $region16: #{opt_net_forward.1} parent=1 // pred_region
      _
    $region17: #{opt_net_forward.1} parent=1 // pred_fallthru
      _
    // Predicated region
    $region18: #{opt_net_forward.1} parent=1 // pred_check
      _
    $region19: #{opt_net_forward.1} parent=1 // pred_check_branch
      %25 = sbr.rel (0) target = $region21
    $region20: #{opt_net_forward.1} parent=1 // pred_region
      _
    $region21: #{opt_net_forward.1} parent=1 // pred_fallthru
      _
    // Predicated region
    $region22: #{opt_net_forward.1} parent=1 // pred_check
      _
    $region23: #{opt_net_forward.1} parent=1 // pred_check_branch
      %27 = sbr.rel (0) target = $region25
    $region24: #{opt_net_forward.1} parent=1 // pred_region
      _
    $region25: #{opt_net_forward.1} parent=1 // pred_fallthru
      _
    %v28 = vld [vmem:[%s0] sm:$0xff]
    %v29 = vld [vmem:[%s0 + $0x8] sm:$0xff]
    %v30 = vld [vmem:[%s1] sm:$0xff]
    %v31 = vld [vmem:[%s1 + $0x8] sm:$0xff]
    %v32 = vld [vmem:[%s2] sm:$0x1]
    %v34 = vlaneseq
    %v35 = vshrl.u32 %v34, 7
    %v36 = vsub.s32 0, %v35
    %v37 = vrot.slane %v32, %v36
    %vm39 = vcmask 130048
    %v41 = vsel %vm39, %v28, 0
    %v44 = vsel %vm39, %v29, 0
    %46 = vmatprep.subr.mxu0 0.0
    %47 = vmatpush1.msra.mxu0 %v30
    %48 = vmatprep.subr.mxu0 0.0
    %49 = vmatpush1.msra.mxu0 %v31
    %50 = vmatprep.subr.mxu0 0.0
    %51 = vmatpush1.msra.mxu0 0.0
    %52 = vmatprep.subr.mxu0 0.0
    %53 = vmatpush1.msra.mxu0 0.0
    %54 = vmatprep.subr.mxu0 0.0
    %55 = vmatpush1.msra.mxu0 0.0
    %56 = vmatprep.subr.mxu0 0.0
    %57 = vmatpush1.msra.mxu0 0.0
    %58 = vmatprep.subr.mxu0 0.0
    %59 = vmatpush1.msra.mxu0 0.0
    %60 = vmatprep.subr.mxu0 0.0
    %61 = vmatpush1.msra.mxu0 0.0
    %62 = vmatprep.subr.mxu0 0.0
    %63 = vmatpush1.msra.mxu0 0.0
    %64 = vmatprep.subr.mxu0 0.0
    %65 = vmatpush1.msra.mxu0 0.0
    %66 = vmatprep.subr.mxu0 0.0
    %67 = vmatpush1.msra.mxu0 0.0
    %68 = vmatprep.subr.mxu0 0.0
    %69 = vmatpush1.msra.mxu0 0.0
    %70 = vmatprep.subr.mxu0 0.0
    %71 = vmatpush1.msra.mxu0 0.0
    %72 = vmatprep.subr.mxu0 0.0
    %73 = vmatpush1.msra.mxu0 0.0
    %74 = vmatprep.subr.mxu0 0.0
    %75 = vmatpush1.msra.mxu0 0.0
    %76 = vmatprep.subr.mxu0 0.0
    %77 = vmatpush1.msra.mxu0 0.0
    %78 = vmatprep.subr.mxu0 0.0
    %79 = vmatpush1.msra.mxu0 0.0
    %80 = vmatprep.subr.mxu0 0.0
    %81 = vmatpush1.msra.mxu0 0.0
    %82 = vmatprep.subr.mxu0 0.0
    %83 = vmatpush1.msra.mxu0 0.0
    %84 = vmatprep.subr.mxu0 0.0
    %85 = vmatpush1.msra.mxu0 0.0
    %86 = vmatprep.subr.mxu0 0.0
    %87 = vmatpush1.msra.mxu0 0.0
    %88 = vmatprep.subr.mxu0 0.0
    %89 = vmatpush1.msra.mxu0 0.0
    %90 = vmatprep.subr.mxu0 0.0
    %91 = vmatpush1.msra.mxu0 0.0
    %92 = vmatprep.subr.mxu0 0.0
    %93 = vmatpush1.msra.mxu0 0.0
    %94 = vmatprep.subr.mxu0 0.0
    %95 = vmatpush1.msra.mxu0 0.0
    %96 = vmatprep.subr.mxu0 0.0
    %97 = vmatpush1.msra.mxu0 0.0
    %98 = vmatprep.subr.mxu0 0.0
    %99 = vmatpush1.msra.mxu0 0.0
    %100 = vmatprep.subr.mxu0 0.0
    %101 = vmatpush1.msra.mxu0 0.0
    %102 = vmatprep.subr.mxu0 0.0
    %103 = vmatpush1.msra.mxu0 0.0
    %104 = vmatprep.subr.mxu0 0.0
    %105 = vmatpush1.msra.mxu0 0.0
    %106 = vmatprep.subr.mxu0 0.0
    %107 = vmatpush1.msra.mxu0 0.0
    %108 = vmatprep.subr.mxu0 0.0
    %109 = vmatpush1.msra.mxu0 0.0
    %110 = vmatprep.mubr.f32.mxu0 0.0
    %111 = vmatmul.mubr.f32.gmra.mrb[0].mxu0 %v41
    %v112 = vpop.f32.mrb[0].mxu0
    %v113 = vadd.f32 %v37, %v112
    %v114 = vpop.f32.mrb[0].mxu0
    %115 = vmatprep.mubr.f32.mxu0 0.0
    %116 = vmatmul.mubr.f32.gmra.mrb[0].mxu0 %v44
    %v117 = vpop.f32.mrb[0].mxu0
    %v118 = vadd.f32 %v37, %v117
    %v119 = vpop.f32.mrb[0].mxu0
    %120 = vdwg.mxu0
    %v121 = vld [vmem:[%s4] sm:$0x3]
    %v122 = vld [vmem:[%s5] sm:$0x3]
    %v123 = vld [vmem:[%s3] sm:$0xff]
    %v124 = vld [vmem:[%s3 + $0x8] sm:$0xff]
    %v125 = vld [vmem:[%s3 + $0x10] sm:$0xff]
    %v126 = vld [vmem:[%s3 + $0x18] sm:$0xff]
    %vm127 = vcmask 261120
    %v129 = vsel %vm127, %v121, 0
    %131 = vmatprep.subr.mxu0 0.0
    %132 = vmatpush1.msra.mxu0 %v123
    %133 = vmatprep.subr.mxu0 0.0
    %134 = vmatpush1.msra.mxu0 %v124
    %135 = vmatprep.subr.mxu0 0.0
    %136 = vmatpush1.msra.mxu0 %v125
    %137 = vmatprep.subr.mxu0 0.0
    %138 = vmatpush1.msra.mxu0 %v126
    %139 = vmatprep.subr.mxu0 0.0
    %140 = vmatpush1.msra.mxu0 0.0
    %141 = vmatprep.subr.mxu0 0.0
    %142 = vmatpush1.msra.mxu0 0.0
    %143 = vmatprep.subr.mxu0 0.0
    %144 = vmatpush1.msra.mxu0 0.0
    %145 = vmatprep.subr.mxu0 0.0
    %146 = vmatpush1.msra.mxu0 0.0
    %147 = vmatprep.subr.mxu0 0.0
    %148 = vmatpush1.msra.mxu0 0.0
    %149 = vmatprep.subr.mxu0 0.0
    %150 = vmatpush1.msra.mxu0 0.0
    %151 = vmatprep.subr.mxu0 0.0
    %152 = vmatpush1.msra.mxu0 0.0
    %153 = vmatprep.subr.mxu0 0.0
    %154 = vmatpush1.msra.mxu0 0.0
    %155 = vmatprep.subr.mxu0 0.0
    %156 = vmatpush1.msra.mxu0 0.0
    %157 = vmatprep.subr.mxu0 0.0
    %158 = vmatpush1.msra.mxu0 0.0
    %159 = vmatprep.subr.mxu0 0.0
    %160 = vmatpush1.msra.mxu0 0.0
    %161 = vmatprep.subr.mxu0 0.0
    %162 = vmatpush1.msra.mxu0 0.0
    %163 = vmatprep.subr.mxu0 0.0
    %164 = vmatpush1.msra.mxu0 0.0
    %165 = vmatprep.subr.mxu0 0.0
    %166 = vmatpush1.msra.mxu0 0.0
    %167 = vmatprep.subr.mxu0 0.0
    %168 = vmatpush1.msra.mxu0 0.0
    %169 = vmatprep.subr.mxu0 0.0
    %170 = vmatpush1.msra.mxu0 0.0
    %171 = vmatprep.subr.mxu0 0.0
    %172 = vmatpush1.msra.mxu0 0.0
    %173 = vmatprep.subr.mxu0 0.0
    %174 = vmatpush1.msra.mxu0 0.0
    %175 = vmatprep.subr.mxu0 0.0
    %176 = vmatpush1.msra.mxu0 0.0
    %177 = vmatprep.subr.mxu0 0.0
    %178 = vmatpush1.msra.mxu0 0.0
    %179 = vmatprep.subr.mxu0 0.0
    %180 = vmatpush1.msra.mxu0 0.0
    %181 = vmatprep.subr.mxu0 0.0
    %182 = vmatpush1.msra.mxu0 0.0
    %183 = vmatprep.subr.mxu0 0.0
    %184 = vmatpush1.msra.mxu0 0.0
    %185 = vmatprep.subr.mxu0 0.0
    %186 = vmatpush1.msra.mxu0 0.0
    %187 = vmatprep.subr.mxu0 0.0
    %188 = vmatpush1.msra.mxu0 0.0
    %189 = vmatprep.subr.mxu0 0.0
    %190 = vmatpush1.msra.mxu0 0.0
    %191 = vmatprep.subr.mxu0 0.0
    %192 = vmatpush1.msra.mxu0 0.0
    %193 = vmatprep.subr.mxu0 0.0
    %194 = vmatpush1.msra.mxu0 0.0
    %195 = vmatprep.mubr.f32.mxu0 0.0
    %196 = vmatmul.mubr.f32.gmra.mrb[0].mxu0 %v129
    %v197 = vpop.f32.mrb[0].mxu0
    %v198 = vadd.f32 0.0, %v197
    %v199 = vpop.f32.mrb[0].mxu0
    %200 = vdwg.mxu0
    %v201 = vadd.f32 %v113, %v198
    %v202 = vxor.u32 %v201, 2147483648
    %v203 = vmul.f32 %v202, 1.442695
    %v204 = vpow.pop %v203
    %v205 = vadd.f32 %v204, 1.0
    %v206 = vrcp.pop %v205
    %v207 = vmul.f32 1.0, %v206
    %v208 = vmul.f32 %v207, 2.0
    %v209 = vsub.f32 %v208, 1.0
    %211 = vrot.lane.b32.xlu0 %v122, 32
    %v212 = vpop.permute.xlu0 %211
    %v214 = vmul.f32 %v207, %v212
    %216 = vrot.lane.b32.xlu0 %v209, 64
    %v217 = vpop.permute.xlu0 %216
    %v219 = vmul.f32 %v207, %v217
    %221 = vrot.lane.b32.xlu0 %v219, 32
    %v222 = vpop.permute.xlu0 %221
    %v224 = vadd.f32 %v214, %v222
    %v225 = vtanh.pop %v224
    %227 = vrot.lane.b32.xlu0 %v225, 64
    %v228 = vpop.permute.xlu0 %227
    %v230 = vmul.f32 %v207, %v228
    %v233 = vunpack.c.l.s4 1983009808
    %v234 = vunpack.c.0.s8 %v233
    %v235 = vlaneseq
    %v236 = vshrl.u32 %v235, 7
    %v237 = vsub.s32 %v234, %v236
    %v238 = vrot.slane %v230, %v237
    %239 = vrot.lane.b32.xlu0 %v238, 32
    %v240 = vpop.permute.xlu0 %239
    %vm242 = vcmask 254976
    %243 = vst.msk [vmem:[%s6] sm:$0x3] %vm242, %v240
    %244 = vrot.lane.b32.xlu0 %v230, 32
    %v245 = vpop.permute.xlu0 %244
    %v246 = vsel %vm127, %v245, 0
    %248 = vmatprep.subr.mxu0 0.0
    %249 = vmatpush1.msra.mxu0 %v123
    %250 = vmatprep.subr.mxu0 0.0
    %251 = vmatpush1.msra.mxu0 %v124
    %252 = vmatprep.subr.mxu0 0.0
    %253 = vmatpush1.msra.mxu0 %v125
    %254 = vmatprep.subr.mxu0 0.0
    %255 = vmatpush1.msra.mxu0 %v126
    %256 = vmatprep.subr.mxu0 0.0
    %257 = vmatpush1.msra.mxu0 0.0
    %258 = vmatprep.subr.mxu0 0.0
    %259 = vmatpush1.msra.mxu0 0.0
    %260 = vmatprep.subr.mxu0 0.0
    %261 = vmatpush1.msra.mxu0 0.0
    %262 = vmatprep.subr.mxu0 0.0
    %263 = vmatpush1.msra.mxu0 0.0
    %264 = vmatprep.subr.mxu0 0.0
    %265 = vmatpush1.msra.mxu0 0.0
    %266 = vmatprep.subr.mxu0 0.0
    %267 = vmatpush1.msra.mxu0 0.0
    %268 = vmatprep.subr.mxu0 0.0
    %269 = vmatpush1.msra.mxu0 0.0
    %270 = vmatprep.subr.mxu0 0.0
    %271 = vmatpush1.msra.mxu0 0.0
    %272 = vmatprep.subr.mxu0 0.0
    %273 = vmatpush1.msra.mxu0 0.0
    %274 = vmatprep.subr.mxu0 0.0
    %275 = vmatpush1.msra.mxu0 0.0
    %276 = vmatprep.subr.mxu0 0.0
    %277 = vmatpush1.msra.mxu0 0.0
    %278 = vmatprep.subr.mxu0 0.0
    %279 = vmatpush1.msra.mxu0 0.0
    %280 = vmatprep.subr.mxu0 0.0
    %281 = vmatpush1.msra.mxu0 0.0
    %282 = vmatprep.subr.mxu0 0.0
    %283 = vmatpush1.msra.mxu0 0.0
    %284 = vmatprep.subr.mxu0 0.0
    %285 = vmatpush1.msra.mxu0 0.0
    %286 = vmatprep.subr.mxu0 0.0
    %287 = vmatpush1.msra.mxu0 0.0
    %288 = vmatprep.subr.mxu0 0.0
    %289 = vmatpush1.msra.mxu0 0.0
    %290 = vmatprep.subr.mxu0 0.0
    %291 = vmatpush1.msra.mxu0 0.0
    %292 = vmatprep.subr.mxu0 0.0
    %293 = vmatpush1.msra.mxu0 0.0
    %294 = vmatprep.subr.mxu0 0.0
    %295 = vmatpush1.msra.mxu0 0.0
    %296 = vmatprep.subr.mxu0 0.0
    %297 = vmatpush1.msra.mxu0 0.0
    %298 = vmatprep.subr.mxu0 0.0
    %299 = vmatpush1.msra.mxu0 0.0
    %300 = vmatprep.subr.mxu0 0.0
    %301 = vmatpush1.msra.mxu0 0.0
    %302 = vmatprep.subr.mxu0 0.0
    %303 = vmatpush1.msra.mxu0 0.0
    %304 = vmatprep.subr.mxu0 0.0
    %305 = vmatpush1.msra.mxu0 0.0
    %306 = vmatprep.subr.mxu0 0.0
    %307 = vmatpush1.msra.mxu0 0.0
    %308 = vmatprep.subr.mxu0 0.0
    %309 = vmatpush1.msra.mxu0 0.0
    %310 = vmatprep.subr.mxu0 0.0
    %311 = vmatpush1.msra.mxu0 0.0
    %312 = vmatprep.mubr.f32.mxu0 0.0
    %313 = vmatmul.mubr.f32.gmra.mrb[0].mxu0 %v246
    %v314 = vpop.f32.mrb[0].mxu0
    %v315 = vadd.f32 0.0, %v314
    %v316 = vpop.f32.mrb[0].mxu0
    %317 = vdwg.mxu0
    %v319 = vrot.slane %v315, 6
    %v321 = vadd.f32 %v113, %v319
    %v322 = vxor.u32 %v321, 2147483648
    %v323 = vmul.f32 %v322, 1.442695
    %v324 = vpow.pop %v323
    %v325 = vadd.f32 %v324, 1.0
    %v326 = vrcp.pop %v325
    %v327 = vmul.f32 1.0, %v326
    %v328 = vmul.f32 %v327, 2.0
    %v329 = vsub.f32 %v328, 1.0
    %v331 = vrot.slane %v224, 6
    %v333 = vmul.f32 %v327, %v331
    %335 = vrot.lane.b32.xlu0 %v329, 64
    %v336 = vpop.permute.xlu0 %335
    %v338 = vmul.f32 %v327, %v336
    %340 = vrot.lane.b32.xlu0 %v338, 32
    %v341 = vpop.permute.xlu0 %340
    %v343 = vadd.f32 %v333, %v341
    %v344 = vtanh.pop %v343
    %346 = vrot.lane.b32.xlu0 %v344, 64
    %v347 = vpop.permute.xlu0 %346
    %v349 = vmul.f32 %v327, %v347
    %v352 = vunpack.c.l.s4 1983009808
    %v353 = vunpack.c.0.s8 %v352
    %v354 = vlaneseq
    %v355 = vshrl.u32 %v354, 7
    %v356 = vsub.s32 %v353, %v355
    %v357 = vrot.slane %v349, %v356
    %v358 = vcombine.high %v357, %v357
    %359 = vrot.lane.b32.xlu0 %v358, 64
    %v360 = vpop.permute.xlu0 %359
    %vm362 = vcmask 517376
    %363 = vst.msk [vmem:[%s6] sm:$0x3] %vm362, %v360
    %v364 = vrot.slane %v349, 2
    %365 = vrot.lane.b32.xlu0 %v364, 32
    %v366 = vpop.permute.xlu0 %365
    %v367 = vsel %vm127, %v366, 0
    %369 = vmatprep.subr.mxu0 0.0
    %370 = vmatpush1.msra.mxu0 %v123
    %371 = vmatprep.subr.mxu0 0.0
    %372 = vmatpush1.msra.mxu0 %v124
    %373 = vmatprep.subr.mxu0 0.0
    %374 = vmatpush1.msra.mxu0 %v125
    %375 = vmatprep.subr.mxu0 0.0
    %376 = vmatpush1.msra.mxu0 %v126
    %377 = vmatprep.subr.mxu0 0.0
    %378 = vmatpush1.msra.mxu0 0.0
    %379 = vmatprep.subr.mxu0 0.0
    %380 = vmatpush1.msra.mxu0 0.0
    %381 = vmatprep.subr.mxu0 0.0
    %382 = vmatpush1.msra.mxu0 0.0
    %383 = vmatprep.subr.mxu0 0.0
    %384 = vmatpush1.msra.mxu0 0.0
    %385 = vmatprep.subr.mxu0 0.0
    %386 = vmatpush1.msra.mxu0 0.0
    %387 = vmatprep.subr.mxu0 0.0
    %388 = vmatpush1.msra.mxu0 0.0
    %389 = vmatprep.subr.mxu0 0.0
    %390 = vmatpush1.msra.mxu0 0.0
    %391 = vmatprep.subr.mxu0 0.0
    %392 = vmatpush1.msra.mxu0 0.0
    %393 = vmatprep.subr.mxu0 0.0
    %394 = vmatpush1.msra.mxu0 0.0
    %395 = vmatprep.subr.mxu0 0.0
    %396 = vmatpush1.msra.mxu0 0.0
    %397 = vmatprep.subr.mxu0 0.0
    %398 = vmatpush1.msra.mxu0 0.0
    %399 = vmatprep.subr.mxu0 0.0
    %400 = vmatpush1.msra.mxu0 0.0
    %401 = vmatprep.subr.mxu0 0.0
    %402 = vmatpush1.msra.mxu0 0.0
    %403 = vmatprep.subr.mxu0 0.0
    %404 = vmatpush1.msra.mxu0 0.0
    %405 = vmatprep.subr.mxu0 0.0
    %406 = vmatpush1.msra.mxu0 0.0
    %407 = vmatprep.subr.mxu0 0.0
    %408 = vmatpush1.msra.mxu0 0.0
    %409 = vmatprep.subr.mxu0 0.0
    %410 = vmatpush1.msra.mxu0 0.0
    %411 = vmatprep.subr.mxu0 0.0
    %412 = vmatpush1.msra.mxu0 0.0
    %413 = vmatprep.subr.mxu0 0.0
    %414 = vmatpush1.msra.mxu0 0.0
    %415 = vmatprep.subr.mxu0 0.0
    %416 = vmatpush1.msra.mxu0 0.0
    %417 = vmatprep.subr.mxu0 0.0
    %418 = vmatpush1.msra.mxu0 0.0
    %419 = vmatprep.subr.mxu0 0.0
    %420 = vmatpush1.msra.mxu0 0.0
    %421 = vmatprep.subr.mxu0 0.0
    %422 = vmatpush1.msra.mxu0 0.0
    %423 = vmatprep.subr.mxu0 0.0
    %424 = vmatpush1.msra.mxu0 0.0
    %425 = vmatprep.subr.mxu0 0.0
    %426 = vmatpush1.msra.mxu0 0.0
    %427 = vmatprep.subr.mxu0 0.0
    %428 = vmatpush1.msra.mxu0 0.0
    %429 = vmatprep.subr.mxu0 0.0
    %430 = vmatpush1.msra.mxu0 0.0
    %431 = vmatprep.subr.mxu0 0.0
    %432 = vmatpush1.msra.mxu0 0.0
    %433 = vmatprep.mubr.f32.mxu0 0.0
    %434 = vmatmul.mubr.f32.gmra.mrb[0].mxu0 %v367
    %v435 = vpop.f32.mrb[0].mxu0
    %v436 = vadd.f32 0.0, %v435
    %v437 = vpop.f32.mrb[0].mxu0
    %438 = vdwg.mxu0
    %v440 = vrot.slane %v436, 4
    %v442 = vadd.f32 %v113, %v440
    %v443 = vxor.u32 %v442, 2147483648
    %v444 = vmul.f32 %v443, 1.442695
    %v445 = vpow.pop %v444
    %v446 = vadd.f32 %v445, 1.0
    %v447 = vrcp.pop %v446
    %v448 = vmul.f32 1.0, %v447
    %v449 = vmul.f32 %v448, 2.0
    %v450 = vsub.f32 %v449, 1.0
    %v452 = vrot.slane %v343, 6
    %v454 = vmul.f32 %v448, %v452
    %456 = vrot.lane.b32.xlu0 %v450, 64
    %v457 = vpop.permute.xlu0 %456
    %v459 = vmul.f32 %v448, %v457
    %461 = vrot.lane.b32.xlu0 %v459, 32
    %v462 = vpop.permute.xlu0 %461
    %v464 = vadd.f32 %v454, %v462
    %v465 = vtanh.pop %v464
    %467 = vrot.lane.b32.xlu0 %v465, 64
    %v468 = vpop.permute.xlu0 %467
    %v470 = vmul.f32 %v448, %v468
    %v472 = vcombine.high %v470, %v470
    %v474 = vunpack.c.l.s4 1983009808
    %v475 = vunpack.c.0.s8 %v474
    %v476 = vlaneseq
    %v477 = vshrl.u32 %v476, 7
    %v478 = vsub.s32 %v475, %v477
    %v479 = vrot.slane %v472, %v478
    %480 = vrot.lane.b32.xlu0 %v479, 96
    %v481 = vpop.permute.xlu0 %480
    %vm483 = vcmask 779776
    %484 = vst.msk [vmem:[%s6] sm:$0x3] %vm483, %v481
    %v485 = vrot.slane %v470, 4
    %486 = vrot.lane.b32.xlu0 %v485, 32
    %v487 = vpop.permute.xlu0 %486
    %v488 = vsel %vm127, %v487, 0
    %490 = vmatprep.subr.mxu0 0.0
    %491 = vmatpush1.msra.mxu0 %v123
    %492 = vmatprep.subr.mxu0 0.0
    %493 = vmatpush1.msra.mxu0 %v124
    %494 = vmatprep.subr.mxu0 0.0
    %495 = vmatpush1.msra.mxu0 %v125
    %496 = vmatprep.subr.mxu0 0.0
    %497 = vmatpush1.msra.mxu0 %v126
    %498 = vmatprep.subr.mxu0 0.0
    %499 = vmatpush1.msra.mxu0 0.0
    %500 = vmatprep.subr.mxu0 0.0
    %501 = vmatpush1.msra.mxu0 0.0
    %502 = vmatprep.subr.mxu0 0.0
    %503 = vmatpush1.msra.mxu0 0.0
    %504 = vmatprep.subr.mxu0 0.0
    %505 = vmatpush1.msra.mxu0 0.0
    %506 = vmatprep.subr.mxu0 0.0
    %507 = vmatpush1.msra.mxu0 0.0
    %508 = vmatprep.subr.mxu0 0.0
    %509 = vmatpush1.msra.mxu0 0.0
    %510 = vmatprep.subr.mxu0 0.0
    %511 = vmatpush1.msra.mxu0 0.0
    %512 = vmatprep.subr.mxu0 0.0
    %513 = vmatpush1.msra.mxu0 0.0
    %514 = vmatprep.subr.mxu0 0.0
    %515 = vmatpush1.msra.mxu0 0.0
    %516 = vmatprep.subr.mxu0 0.0
    %517 = vmatpush1.msra.mxu0 0.0
    %518 = vmatprep.subr.mxu0 0.0
    %519 = vmatpush1.msra.mxu0 0.0
    %520 = vmatprep.subr.mxu0 0.0
    %521 = vmatpush1.msra.mxu0 0.0
    %522 = vmatprep.subr.mxu0 0.0
    %523 = vmatpush1.msra.mxu0 0.0
    %524 = vmatprep.subr.mxu0 0.0
    %525 = vmatpush1.msra.mxu0 0.0
    %526 = vmatprep.subr.mxu0 0.0
    %527 = vmatpush1.msra.mxu0 0.0
    %528 = vmatprep.subr.mxu0 0.0
    %529 = vmatpush1.msra.mxu0 0.0
    %530 = vmatprep.subr.mxu0 0.0
    %531 = vmatpush1.msra.mxu0 0.0
    %532 = vmatprep.subr.mxu0 0.0
    %533 = vmatpush1.msra.mxu0 0.0
    %534 = vmatprep.subr.mxu0 0.0
    %535 = vmatpush1.msra.mxu0 0.0
    %536 = vmatprep.subr.mxu0 0.0
    %537 = vmatpush1.msra.mxu0 0.0
    %538 = vmatprep.subr.mxu0 0.0
    %539 = vmatpush1.msra.mxu0 0.0
    %540 = vmatprep.subr.mxu0 0.0
    %541 = vmatpush1.msra.mxu0 0.0
    %542 = vmatprep.subr.mxu0 0.0
    %543 = vmatpush1.msra.mxu0 0.0
    %544 = vmatprep.subr.mxu0 0.0
    %545 = vmatpush1.msra.mxu0 0.0
    %546 = vmatprep.subr.mxu0 0.0
    %547 = vmatpush1.msra.mxu0 0.0
    %548 = vmatprep.subr.mxu0 0.0
    %549 = vmatpush1.msra.mxu0 0.0
    %550 = vmatprep.subr.mxu0 0.0
    %551 = vmatpush1.msra.mxu0 0.0
    %552 = vmatprep.subr.mxu0 0.0
    %553 = vmatpush1.msra.mxu0 0.0
    %554 = vmatprep.mubr.f32.mxu0 0.0
    %555 = vmatmul.mubr.f32.gmra.mrb[0].mxu0 %v488
    %v556 = vpop.f32.mrb[0].mxu0
    %v557 = vadd.f32 0.0, %v556
    %v558 = vpop.f32.mrb[0].mxu0
    %559 = vdwg.mxu0
    %v561 = vrot.slane %v557, 2
    %v563 = vadd.f32 %v113, %v561
    %v564 = vxor.u32 %v563, 2147483648
    %v565 = vmul.f32 %v564, 1.442695
    %v566 = vpow.pop %v565
    %v567 = vadd.f32 %v566, 1.0
    %v568 = vrcp.pop %v567
    %v569 = vmul.f32 1.0, %v568
    %v570 = vmul.f32 %v569, 2.0
    %v571 = vsub.f32 %v570, 1.0
    %v573 = vrot.slane %v464, 6
    %v575 = vmul.f32 %v569, %v573
    %577 = vrot.lane.b32.xlu0 %v571, 64
    %v578 = vpop.permute.xlu0 %577
    %v580 = vmul.f32 %v569, %v578
    %582 = vrot.lane.b32.xlu0 %v580, 32
    %v583 = vpop.permute.xlu0 %582
    %v585 = vadd.f32 %v575, %v583
    %v586 = vtanh.pop %v585
    %588 = vrot.lane.b32.xlu0 %v586, 64
    %v589 = vpop.permute.xlu0 %588
    %v591 = vmul.f32 %v569, %v589
    %v593 = vcombine.high %v591, %v591
    %v595 = vunpack.c.l.s4 1983009808
    %v596 = vunpack.c.0.s8 %v595
    %v597 = vlaneseq
    %v598 = vshrl.u32 %v597, 7
    %v599 = vsub.s32 %v596, %v598
    %v600 = vrot.slane %v593, %v599
    %v601 = vcombine.high %v600, %v600
    %vm603 = vcmask 1042176
    %604 = vst.msk [vmem:[%s6] sm:$0x3] %vm603, %v601
    %v605 = vrot.slane %v591, 6
    %606 = vrot.lane.b32.xlu0 %v605, 32
    %v607 = vpop.permute.xlu0 %606
    %v608 = vsel %vm127, %v607, 0
    %610 = vmatprep.subr.mxu0 0.0
    %611 = vmatpush1.msra.mxu0 %v123
    %612 = vmatprep.subr.mxu0 0.0
    %613 = vmatpush1.msra.mxu0 %v124
    %614 = vmatprep.subr.mxu0 0.0
    %615 = vmatpush1.msra.mxu0 %v125
    %616 = vmatprep.subr.mxu0 0.0
    %617 = vmatpush1.msra.mxu0 %v126
    %618 = vmatprep.subr.mxu0 0.0
    %619 = vmatpush1.msra.mxu0 0.0
    %620 = vmatprep.subr.mxu0 0.0
    %621 = vmatpush1.msra.mxu0 0.0
    %622 = vmatprep.subr.mxu0 0.0
    %623 = vmatpush1.msra.mxu0 0.0
    %624 = vmatprep.subr.mxu0 0.0
    %625 = vmatpush1.msra.mxu0 0.0
    %626 = vmatprep.subr.mxu0 0.0
    %627 = vmatpush1.msra.mxu0 0.0
    %628 = vmatprep.subr.mxu0 0.0
    %629 = vmatpush1.msra.mxu0 0.0
    %630 = vmatprep.subr.mxu0 0.0
    %631 = vmatpush1.msra.mxu0 0.0
    %632 = vmatprep.subr.mxu0 0.0
    %633 = vmatpush1.msra.mxu0 0.0
    %634 = vmatprep.subr.mxu0 0.0
    %635 = vmatpush1.msra.mxu0 0.0
    %636 = vmatprep.subr.mxu0 0.0
    %637 = vmatpush1.msra.mxu0 0.0
    %638 = vmatprep.subr.mxu0 0.0
    %639 = vmatpush1.msra.mxu0 0.0
    %640 = vmatprep.subr.mxu0 0.0
    %641 = vmatpush1.msra.mxu0 0.0
    %642 = vmatprep.subr.mxu0 0.0
    %643 = vmatpush1.msra.mxu0 0.0
    %644 = vmatprep.subr.mxu0 0.0
    %645 = vmatpush1.msra.mxu0 0.0
    %646 = vmatprep.subr.mxu0 0.0
    %647 = vmatpush1.msra.mxu0 0.0
    %648 = vmatprep.subr.mxu0 0.0
    %649 = vmatpush1.msra.mxu0 0.0
    %650 = vmatprep.subr.mxu0 0.0
    %651 = vmatpush1.msra.mxu0 0.0
    %652 = vmatprep.subr.mxu0 0.0
    %653 = vmatpush1.msra.mxu0 0.0
    %654 = vmatprep.subr.mxu0 0.0
    %655 = vmatpush1.msra.mxu0 0.0
    %656 = vmatprep.subr.mxu0 0.0
    %657 = vmatpush1.msra.mxu0 0.0
    %658 = vmatprep.subr.mxu0 0.0
    %659 = vmatpush1.msra.mxu0 0.0
    %660 = vmatprep.subr.mxu0 0.0
    %661 = vmatpush1.msra.mxu0 0.0
    %662 = vmatprep.subr.mxu0 0.0
    %663 = vmatpush1.msra.mxu0 0.0
    %664 = vmatprep.subr.mxu0 0.0
    %665 = vmatpush1.msra.mxu0 0.0
    %666 = vmatprep.subr.mxu0 0.0
    %667 = vmatpush1.msra.mxu0 0.0
    %668 = vmatprep.subr.mxu0 0.0
    %669 = vmatpush1.msra.mxu0 0.0
    %670 = vmatprep.subr.mxu0 0.0
    %671 = vmatpush1.msra.mxu0 0.0
    %672 = vmatprep.subr.mxu0 0.0
    %673 = vmatpush1.msra.mxu0 0.0
    %674 = vmatprep.mubr.f32.mxu0 0.0
    %675 = vmatmul.mubr.f32.gmra.mrb[0].mxu0 %v608
    %v676 = vpop.f32.mrb[0].mxu0
    %v677 = vadd.f32 0.0, %v676
    %v678 = vpop.f32.mrb[0].mxu0
    %679 = vdwg.mxu0
    %v680 = vadd.f32 %v118, %v677
    %v681 = vxor.u32 %v680, 2147483648
    %v682 = vmul.f32 %v681, 1.442695
    %v683 = vpow.pop %v682
    %v684 = vadd.f32 %v683, 1.0
    %v685 = vrcp.pop %v684
    %v686 = vmul.f32 1.0, %v685
    %v687 = vmul.f32 %v686, 2.0
    %v688 = vsub.f32 %v687, 1.0
    %v690 = vrot.slane %v585, 6
    %v692 = vmul.f32 %v686, %v690
    %694 = vrot.lane.b32.xlu0 %v688, 64
    %v695 = vpop.permute.xlu0 %694
    %v697 = vmul.f32 %v686, %v695
    %699 = vrot.lane.b32.xlu0 %v697, 32
    %v700 = vpop.permute.xlu0 %699
    %v702 = vadd.f32 %v692, %v700
    %v703 = vtanh.pop %v702
    %705 = vrot.lane.b32.xlu0 %v703, 64
    %v706 = vpop.permute.xlu0 %705
    %v708 = vmul.f32 %v686, %v706
    %v711 = vunpack.c.l.s4 1983009808
    %v712 = vunpack.c.0.s8 %v711
    %v713 = vlaneseq
    %v714 = vshrl.u32 %v713, 7
    %v715 = vsub.s32 %v712, %v714
    %v716 = vrot.slane %v708, %v715
    %717 = vrot.lane.b32.xlu0 %v716, 32
    %v718 = vpop.permute.xlu0 %717
    %720 = vst.msk [vmem:[%s6 + $0x2] sm:$0x3] %vm242, %v718
    %721 = vrot.lane.b32.xlu0 %v708, 32
    %v722 = vpop.permute.xlu0 %721
    %v723 = vsel %vm127, %v722, 0
    %725 = vmatprep.subr.mxu0 0.0
    %726 = vmatpush1.msra.mxu0 %v123
    %727 = vmatprep.subr.mxu0 0.0
    %728 = vmatpush1.msra.mxu0 %v124
    %729 = vmatprep.subr.mxu0 0.0
    %730 = vmatpush1.msra.mxu0 %v125
    %731 = vmatprep.subr.mxu0 0.0
    %732 = vmatpush1.msra.mxu0 %v126
    %733 = vmatprep.subr.mxu0 0.0
    %734 = vmatpush1.msra.mxu0 0.0
    %735 = vmatprep.subr.mxu0 0.0
    %736 = vmatpush1.msra.mxu0 0.0
    %737 = vmatprep.subr.mxu0 0.0
    %738 = vmatpush1.msra.mxu0 0.0
    %739 = vmatprep.subr.mxu0 0.0
    %740 = vmatpush1.msra.mxu0 0.0
    %741 = vmatprep.subr.mxu0 0.0
    %742 = vmatpush1.msra.mxu0 0.0
    %743 = vmatprep.subr.mxu0 0.0
    %744 = vmatpush1.msra.mxu0 0.0
    %745 = vmatprep.subr.mxu0 0.0
    %746 = vmatpush1.msra.mxu0 0.0
    %747 = vmatprep.subr.mxu0 0.0
    %748 = vmatpush1.msra.mxu0 0.0
    %749 = vmatprep.subr.mxu0 0.0
    %750 = vmatpush1.msra.mxu0 0.0
    %751 = vmatprep.subr.mxu0 0.0
    %752 = vmatpush1.msra.mxu0 0.0
    %753 = vmatprep.subr.mxu0 0.0
    %754 = vmatpush1.msra.mxu0 0.0
    %755 = vmatprep.subr.mxu0 0.0
    %756 = vmatpush1.msra.mxu0 0.0
    %757 = vmatprep.subr.mxu0 0.0
    %758 = vmatpush1.msra.mxu0 0.0
    %759 = vmatprep.subr.mxu0 0.0
    %760 = vmatpush1.msra.mxu0 0.0
    %761 = vmatprep.subr.mxu0 0.0
    %762 = vmatpush1.msra.mxu0 0.0
    %763 = vmatprep.subr.mxu0 0.0
    %764 = vmatpush1.msra.mxu0 0.0
    %765 = vmatprep.subr.mxu0 0.0
    %766 = vmatpush1.msra.mxu0 0.0
    %767 = vmatprep.subr.mxu0 0.0
    %768 = vmatpush1.msra.mxu0 0.0
    %769 = vmatprep.subr.mxu0 0.0
    %770 = vmatpush1.msra.mxu0 0.0
    %771 = vmatprep.subr.mxu0 0.0
    %772 = vmatpush1.msra.mxu0 0.0
    %773 = vmatprep.subr.mxu0 0.0
    %774 = vmatpush1.msra.mxu0 0.0
    %775 = vmatprep.subr.mxu0 0.0
    %776 = vmatpush1.msra.mxu0 0.0
    %777 = vmatprep.subr.mxu0 0.0
    %778 = vmatpush1.msra.mxu0 0.0
    %779 = vmatprep.subr.mxu0 0.0
    %780 = vmatpush1.msra.mxu0 0.0
    %781 = vmatprep.subr.mxu0 0.0
    %782 = vmatpush1.msra.mxu0 0.0
    %783 = vmatprep.subr.mxu0 0.0
    %784 = vmatpush1.msra.mxu0 0.0
    %785 = vmatprep.subr.mxu0 0.0
    %786 = vmatpush1.msra.mxu0 0.0
    %787 = vmatprep.subr.mxu0 0.0
    %788 = vmatpush1.msra.mxu0 0.0
    %789 = vmatprep.mubr.f32.mxu0 0.0
    %790 = vmatmul.mubr.f32.gmra.mrb[0].mxu0 %v723
    %v791 = vpop.f32.mrb[0].mxu0
    %v792 = vadd.f32 0.0, %v791
    %v793 = vpop.f32.mrb[0].mxu0
    %794 = vdwg.mxu0
    %v796 = vrot.slane %v792, 6
    %v798 = vadd.f32 %v118, %v796
    %v799 = vxor.u32 %v798, 2147483648
    %v800 = vmul.f32 %v799, 1.442695
    %v801 = vpow.pop %v800
    %v802 = vadd.f32 %v801, 1.0
    %v803 = vrcp.pop %v802
    %v804 = vmul.f32 1.0, %v803
    %v805 = vmul.f32 %v804, 2.0
    %v806 = vsub.f32 %v805, 1.0
    %v808 = vrot.slane %v702, 6
    %v810 = vmul.f32 %v804, %v808
    %812 = vrot.lane.b32.xlu0 %v806, 64
    %v813 = vpop.permute.xlu0 %812
    %v815 = vmul.f32 %v804, %v813
    %817 = vrot.lane.b32.xlu0 %v815, 32
    %v818 = vpop.permute.xlu0 %817
    %v820 = vadd.f32 %v810, %v818
    %v821 = vtanh.pop %v820
    %823 = vrot.lane.b32.xlu0 %v821, 64
    %v824 = vpop.permute.xlu0 %823
    %v826 = vmul.f32 %v804, %v824
    %v829 = vunpack.c.l.s4 1983009808
    %v830 = vunpack.c.0.s8 %v829
    %v831 = vlaneseq
    %v832 = vshrl.u32 %v831, 7
    %v833 = vsub.s32 %v830, %v832
    %v834 = vrot.slane %v826, %v833
    %v835 = vcombine.high %v834, %v834
    %836 = vrot.lane.b32.xlu0 %v835, 64
    %v837 = vpop.permute.xlu0 %836
    %839 = vst.msk [vmem:[%s6 + $0x2] sm:$0x3] %vm362, %v837
    %v840 = vrot.slane %v826, 2
    %841 = vrot.lane.b32.xlu0 %v840, 32
    %v842 = vpop.permute.xlu0 %841
    %v843 = vsel %vm127, %v842, 0
    %845 = vmatprep.subr.mxu0 0.0
    %846 = vmatpush1.msra.mxu0 %v123
    %847 = vmatprep.subr.mxu0 0.0
    %848 = vmatpush1.msra.mxu0 %v124
    %849 = vmatprep.subr.mxu0 0.0
    %850 = vmatpush1.msra.mxu0 %v125
    %851 = vmatprep.subr.mxu0 0.0
    %852 = vmatpush1.msra.mxu0 %v126
    %853 = vmatprep.subr.mxu0 0.0
    %854 = vmatpush1.msra.mxu0 0.0
    %855 = vmatprep.subr.mxu0 0.0
    %856 = vmatpush1.msra.mxu0 0.0
    %857 = vmatprep.subr.mxu0 0.0
    %858 = vmatpush1.msra.mxu0 0.0
    %859 = vmatprep.subr.mxu0 0.0
    %860 = vmatpush1.msra.mxu0 0.0
    %861 = vmatprep.subr.mxu0 0.0
    %862 = vmatpush1.msra.mxu0 0.0
    %863 = vmatprep.subr.mxu0 0.0
    %864 = vmatpush1.msra.mxu0 0.0
    %865 = vmatprep.subr.mxu0 0.0
    %866 = vmatpush1.msra.mxu0 0.0
    %867 = vmatprep.subr.mxu0 0.0
    %868 = vmatpush1.msra.mxu0 0.0
    %869 = vmatprep.subr.mxu0 0.0
    %870 = vmatpush1.msra.mxu0 0.0
    %871 = vmatprep.subr.mxu0 0.0
    %872 = vmatpush1.msra.mxu0 0.0
    %873 = vmatprep.subr.mxu0 0.0
    %874 = vmatpush1.msra.mxu0 0.0
    %875 = vmatprep.subr.mxu0 0.0
    %876 = vmatpush1.msra.mxu0 0.0
    %877 = vmatprep.subr.mxu0 0.0
    %878 = vmatpush1.msra.mxu0 0.0
    %879 = vmatprep.subr.mxu0 0.0
    %880 = vmatpush1.msra.mxu0 0.0
    %881 = vmatprep.subr.mxu0 0.0
    %882 = vmatpush1.msra.mxu0 0.0
    %883 = vmatprep.subr.mxu0 0.0
    %884 = vmatpush1.msra.mxu0 0.0
    %885 = vmatprep.subr.mxu0 0.0
    %886 = vmatpush1.msra.mxu0 0.0
    %887 = vmatprep.subr.mxu0 0.0
    %888 = vmatpush1.msra.mxu0 0.0
    %889 = vmatprep.subr.mxu0 0.0
    %890 = vmatpush1.msra.mxu0 0.0
    %891 = vmatprep.subr.mxu0 0.0
    %892 = vmatpush1.msra.mxu0 0.0
    %893 = vmatprep.subr.mxu0 0.0
    %894 = vmatpush1.msra.mxu0 0.0
    %895 = vmatprep.subr.mxu0 0.0
    %896 = vmatpush1.msra.mxu0 0.0
    %897 = vmatprep.subr.mxu0 0.0
    %898 = vmatpush1.msra.mxu0 0.0
    %899 = vmatprep.subr.mxu0 0.0
    %900 = vmatpush1.msra.mxu0 0.0
    %901 = vmatprep.subr.mxu0 0.0
    %902 = vmatpush1.msra.mxu0 0.0
    %903 = vmatprep.subr.mxu0 0.0
    %904 = vmatpush1.msra.mxu0 0.0
    %905 = vmatprep.subr.mxu0 0.0
    %906 = vmatpush1.msra.mxu0 0.0
    %907 = vmatprep.subr.mxu0 0.0
    %908 = vmatpush1.msra.mxu0 0.0
    %909 = vmatprep.mubr.f32.mxu0 0.0
    %910 = vmatmul.mubr.f32.gmra.mrb[0].mxu0 %v843
    %v911 = vpop.f32.mrb[0].mxu0
    %v912 = vadd.f32 0.0, %v911
    %v913 = vpop.f32.mrb[0].mxu0
    %914 = vdwg.mxu0
    %v916 = vrot.slane %v912, 4
    %v918 = vadd.f32 %v118, %v916
    %v919 = vxor.u32 %v918, 2147483648
    %v920 = vmul.f32 %v919, 1.442695
    %v921 = vpow.pop %v920
    %v922 = vadd.f32 %v921, 1.0
    %v923 = vrcp.pop %v922
    %v924 = vmul.f32 1.0, %v923
    %v925 = vmul.f32 %v924, 2.0
    %v926 = vsub.f32 %v925, 1.0
    %v928 = vrot.slane %v820, 6
    %v930 = vmul.f32 %v924, %v928
    %932 = vrot.lane.b32.xlu0 %v926, 64
    %v933 = vpop.permute.xlu0 %932
    %v935 = vmul.f32 %v924, %v933
    %937 = vrot.lane.b32.xlu0 %v935, 32
    %v938 = vpop.permute.xlu0 %937
    %v940 = vadd.f32 %v930, %v938
    %v941 = vtanh.pop %v940
    %943 = vrot.lane.b32.xlu0 %v941, 64
    %v944 = vpop.permute.xlu0 %943
    %v946 = vmul.f32 %v924, %v944
    %v948 = vcombine.high %v946, %v946
    %v950 = vunpack.c.l.s4 1983009808
    %v951 = vunpack.c.0.s8 %v950
    %v952 = vlaneseq
    %v953 = vshrl.u32 %v952, 7
    %v954 = vsub.s32 %v951, %v953
    %v955 = vrot.slane %v948, %v954
    %956 = vrot.lane.b32.xlu0 %v955, 96
    %v957 = vpop.permute.xlu0 %956
    %959 = vst.msk [vmem:[%s6 + $0x2] sm:$0x3] %vm483, %v957
    %v960 = vrot.slane %v946, 4
    %961 = vrot.lane.b32.xlu0 %v960, 32
    %v962 = vpop.permute.xlu0 %961
    %v963 = vsel %vm127, %v962, 0
    %965 = vmatprep.subr.mxu0 0.0
    %966 = vmatpush1.msra.mxu0 %v123
    %967 = vmatprep.subr.mxu0 0.0
    %968 = vmatpush1.msra.mxu0 %v124
    %969 = vmatprep.subr.mxu0 0.0
    %970 = vmatpush1.msra.mxu0 %v125
    %971 = vmatprep.subr.mxu0 0.0
    %972 = vmatpush1.msra.mxu0 %v126
    %973 = vmatprep.subr.mxu0 0.0
    %974 = vmatpush1.msra.mxu0 0.0
    %975 = vmatprep.subr.mxu0 0.0
    %976 = vmatpush1.msra.mxu0 0.0
    %977 = vmatprep.subr.mxu0 0.0
    %978 = vmatpush1.msra.mxu0 0.0
    %979 = vmatprep.subr.mxu0 0.0
    %980 = vmatpush1.msra.mxu0 0.0
    %981 = vmatprep.subr.mxu0 0.0
    %982 = vmatpush1.msra.mxu0 0.0
    %983 = vmatprep.subr.mxu0 0.0
    %984 = vmatpush1.msra.mxu0 0.0
    %985 = vmatprep.subr.mxu0 0.0
    %986 = vmatpush1.msra.mxu0 0.0
    %987 = vmatprep.subr.mxu0 0.0
    %988 = vmatpush1.msra.mxu0 0.0
    %989 = vmatprep.subr.mxu0 0.0
    %990 = vmatpush1.msra.mxu0 0.0
    %991 = vmatprep.subr.mxu0 0.0
    %992 = vmatpush1.msra.mxu0 0.0
    %993 = vmatprep.subr.mxu0 0.0
    %994 = vmatpush1.msra.mxu0 0.0
    %995 = vmatprep.subr.mxu0 0.0
    %996 = vmatpush1.msra.mxu0 0.0
    %997 = vmatprep.subr.mxu0 0.0
    %998 = vmatpush1.msra.mxu0 0.0
    %999 = vmatprep.subr.mxu0 0.0
    %1000 = vmatpush1.msra.mxu0 0.0
    %1001 = vmatprep.subr.mxu0 0.0
    %1002 = vmatpush1.msra.mxu0 0.0
    %1003 = vmatprep.subr.mxu0 0.0
    %1004 = vmatpush1.msra.mxu0 0.0
    %1005 = vmatprep.subr.mxu0 0.0
    %1006 = vmatpush1.msra.mxu0 0.0
    %1007 = vmatprep.subr.mxu0 0.0
    %1008 = vmatpush1.msra.mxu0 0.0
    %1009 = vmatprep.subr.mxu0 0.0
    %1010 = vmatpush1.msra.mxu0 0.0
    %1011 = vmatprep.subr.mxu0 0.0
    %1012 = vmatpush1.msra.mxu0 0.0
    %1013 = vmatprep.subr.mxu0 0.0
    %1014 = vmatpush1.msra.mxu0 0.0
    %1015 = vmatprep.subr.mxu0 0.0
    %1016 = vmatpush1.msra.mxu0 0.0
    %1017 = vmatprep.subr.mxu0 0.0
    %1018 = vmatpush1.msra.mxu0 0.0
    %1019 = vmatprep.subr.mxu0 0.0
    %1020 = vmatpush1.msra.mxu0 0.0
    %1021 = vmatprep.subr.mxu0 0.0
    %1022 = vmatpush1.msra.mxu0 0.0
    %1023 = vmatprep.subr.mxu0 0.0
    %1024 = vmatpush1.msra.mxu0 0.0
    %1025 = vmatprep.subr.mxu0 0.0
    %1026 = vmatpush1.msra.mxu0 0.0
    %1027 = vmatprep.subr.mxu0 0.0
    %1028 = vmatpush1.msra.mxu0 0.0
    %1029 = vmatprep.mubr.f32.mxu0 0.0
    %1030 = vmatmul.mubr.f32.gmra.mrb[0].mxu0 %v963
    %v1031 = vpop.f32.mrb[0].mxu0
    %v1032 = vadd.f32 0.0, %v1031
    %v1033 = vpop.f32.mrb[0].mxu0
    %1034 = vdwg.mxu0
    %v1036 = vrot.slane %v1032, 2
    %v1038 = vadd.f32 %v118, %v1036
    %v1039 = vxor.u32 %v1038, 2147483648
    %v1040 = vmul.f32 %v1039, 1.442695
    %v1041 = vpow.pop %v1040
    %v1042 = vadd.f32 %v1041, 1.0
    %v1043 = vrcp.pop %v1042
    %v1044 = vmul.f32 1.0, %v1043
    %v1045 = vmul.f32 %v1044, 2.0
    %v1046 = vsub.f32 %v1045, 1.0
    %v1048 = vrot.slane %v940, 6
    %v1050 = vmul.f32 %v1044, %v1048
    %1052 = vrot.lane.b32.xlu0 %v1046, 64
    %v1053 = vpop.permute.xlu0 %1052
    %v1055 = vmul.f32 %v1044, %v1053
    %1057 = vrot.lane.b32.xlu0 %v1055, 32
    %v1058 = vpop.permute.xlu0 %1057
    %v1060 = vadd.f32 %v1050, %v1058
    %v1061 = vtanh.pop %v1060
    %1063 = vrot.lane.b32.xlu0 %v1061, 64
    %v1064 = vpop.permute.xlu0 %1063
    %v1066 = vmul.f32 %v1044, %v1064
    %v1068 = vcombine.high %v1066, %v1066
    %v1070 = vunpack.c.l.s4 1983009808
    %v1071 = vunpack.c.0.s8 %v1070
    %v1072 = vlaneseq
    %v1073 = vshrl.u32 %v1072, 7
    %v1074 = vsub.s32 %v1071, %v1073
    %v1075 = vrot.slane %v1068, %v1074
    %v1076 = vcombine.high %v1075, %v1075
    %1078 = vst.msk [vmem:[%s6 + $0x2] sm:$0x3] %vm603, %v1076
    %v1079 = vld [vmem:[%s6] sm:$0xf]
    %v1080 = vxor.u32 %v1079, 2147483648
    %v1081 = vmul.f32 %v1080, 1.442695
    %v1082 = vpow.pop %v1081
    %v1083 = vadd.f32 %v1082, 1.0
    %v1084 = vrcp.pop %v1083
    %v1085 = vmul.f32 1.0, %v1084
    %1086 = vst [vmem:[%s6] sm:$0xf] %v1085
    %1087 = vrot.lane.b32.xlu0 %v1066, 32
    %v1088 = vpop.permute.xlu0 %1087
    %vm1090 = vcmask 261126
    %1091 = vst.msk [vmem:[#allocation2 - $0x6] sm:$0xc0] %vm1090, %v1088
    %1093 = vrot.lane.b32.xlu0 %v1060, 96
    %v1094 = vpop.permute.xlu0 %1093
    %1096 = vst.msk [vmem:[#allocation4 - $0x6] sm:$0xc0] %vm1090, %v1094
    // Predicated region
    $region26: #{opt_net_forward.1} parent=1 // pred_check
      _
    $region27: #{opt_net_forward.1} parent=1 // pred_check_branch
      %1098 = sbr.rel (0) target = $region29
    $region28: #{opt_net_forward.1} parent=1 // pred_region
      _
    $region29: #{opt_net_forward.1} parent=1 // pred_fallthru
      _
    // Predicated region
    $region30: #{opt_net_forward.1} parent=1 // pred_check
      _
    $region31: #{opt_net_forward.1} parent=1 // pred_check_branch
      %1100 = sbr.rel (0) target = $region33
    $region32: #{opt_net_forward.1} parent=1 // pred_region
      %s1102 = ssub.s32 32, 32
      %1103 = vsyncadd [#allocation3], %s1102
      %s1105 = sshll.u32 [#allocation2], 4
      %s1106 = int_to_ptr.vmem [resolvable:$true] %s1105
      %1108 = dma.vmem_to_hbm [thread:$0]  %s1106, 32, %s7, [#allocation3]
    $region33: #{opt_net_forward.1} parent=1 // pred_fallthru
      _
    // Predicated region
    $region34: #{opt_net_forward.1} parent=1 // pred_check
      _
    $region35: #{opt_net_forward.1} parent=1 // pred_check_branch
      %1110 = sbr.rel (0) target = $region37
    $region36: #{opt_net_forward.1} parent=1 // pred_region
      %s1112 = ssub.s32 32, 32
      %1113 = vsyncadd [#allocation5], %s1112
      %s1115 = sshll.u32 [#allocation4], 4
      %s1116 = int_to_ptr.vmem [resolvable:$true] %s1115
      %1118 = dma.vmem_to_hbm [thread:$0]  %s1116, 32, %s8, [#allocation5]
    $region37: #{opt_net_forward.1} parent=1 // pred_fallthru
      _
    // Predicated region
    $region38: #{opt_net_forward.1} parent=1 // pred_check
      _
    $region39: #{opt_net_forward.1} parent=1 // pred_check_branch
      %1120 = sbr.rel (0) target = $region41
    $region40: #{opt_net_forward.1} parent=1 // pred_region
      _
    $region41: #{opt_net_forward.1} parent=1 // pred_fallthru
      _
    // Predicated region
    $region42: #{opt_net_forward.1} parent=1 // pred_check
      _
    $region43: #{opt_net_forward.1} parent=1 // pred_check_branch
      %1122 = sbr.rel (0) target = $region45
    $region44: #{opt_net_forward.1} parent=1 // pred_region
      %1123 = dma.done [#allocation3], 32
    $region45: #{opt_net_forward.1} parent=1 // pred_fallthru
      _
    // Predicated region
    $region46: #{opt_net_forward.1} parent=1 // pred_check
      _
    $region47: #{opt_net_forward.1} parent=1 // pred_check_branch
      %1125 = sbr.rel (0) target = $region49
    $region48: #{opt_net_forward.1} parent=1 // pred_region
      %1126 = dma.done [#allocation5], 32
    $region49: #{opt_net_forward.1} parent=1 // pred_fallthru
      _
    %1127 = vsyncpa [#allocation3], 1
    %1128 = vsyncpa [#allocation5], 1

</llo_original>
